<compile_context>
chip_gen: v7x
topology: tpu7x:2x2x1
jax: 0.10.0
libtpu: 0.0.40
codegen_flags: <defaults>
</compile_context>

<pallas_src>
import functools

import jax
import jax.numpy as jnp
from jax.experimental import pallas as pl
from jax.experimental.pallas import tpu as pltpu

_LANES = 128
_MAX_TILE_ROWS = 2048            # 2048 x 128 f32 = 1 MiB per input buffer
_PARALLEL_CHUNKS = 2             # partial-sum chunks: both TCs on v7x, harmless on 1-TC
_VMEM_LIMIT = 32 * 1024 * 1024   # explicit scoped-VMEM budget (usage is ~5 MiB)


# ----------------------------------------------------------------------------- kernels
def _masked_fold(v, *, rows_total, tile_rows, k_steps, acc_rows, needs_mask):
    """Optionally zero rows past the array end, then fold the tile to (acc_rows, C)."""
    if needs_mask:
        row_block = pl.program_id(0) * k_steps + pl.program_id(1)
        rows_left = rows_total - row_block * tile_rows     # may be <= 0 (clamped block)
        row_ids = jax.lax.broadcasted_iota(jnp.int32, v.shape, 0)
        v = jnp.where(row_ids < rows_left, v, 0.0)
    if acc_rows != tile_rows:
        v = jnp.sum(v.reshape(tile_rows // acc_rows, acc_rows, v.shape[-1]), axis=0)
    return v


def _ssd_kernel(x_ref, y_ref, o_ref, acc_ref, *, rows_total, tile_rows, k_steps,
                acc_rows, needs_mask):
    """Streaming sum((x - y)^2); per-tile widen to f32, small f32 accumulator."""
    k = pl.program_id(1)

    @pl.when(k == 0)
    def _init():
        acc_ref[...] = jnp.zeros_like(acc_ref)

    d = x_ref[...].astype(jnp.float32) - y_ref[...].astype(jnp.float32)
    acc_ref[...] += _masked_fold(d * d, rows_total=rows_total, tile_rows=tile_rows,
                                 k_steps=k_steps, acc_rows=acc_rows,
                                 needs_mask=needs_mask)

    @pl.when(k == k_steps - 1)
    def _fin():
        o_ref[...] = jnp.sum(acc_ref[...], keepdims=True).reshape(1, 1, 1)


def _sumsq_kernel(x_ref, o_ref, acc_ref, *, rows_total, tile_rows, k_steps,
                  acc_rows, needs_mask):
    """Streaming sum(x^2); per-tile widen to f32, small f32 accumulator."""
    k = pl.program_id(1)

    @pl.when(k == 0)
    def _init():
        acc_ref[...] = jnp.zeros_like(acc_ref)

    x = x_ref[...].astype(jnp.float32)
    acc_ref[...] += _masked_fold(x * x, rows_total=rows_total, tile_rows=tile_rows,
                                 k_steps=k_steps, acc_rows=acc_rows,
                                 needs_mask=needs_mask)

    @pl.when(k == k_steps - 1)
    def _fin():
        o_ref[...] = jnp.sum(acc_ref[...], keepdims=True).reshape(1, 1, 1)


def _kl_block_kernel(pm_ref, plv_ref, qm_ref, qlv_ref, o_ref):
    """Per-block KL(N(pm, e^plv) || N(qm, e^qlv)); priors are small resident blocks
    broadcast in-kernel across the batch (sublane) dimension."""
    @pl.when(pl.program_id(0) == 0)
    def _init():
        o_ref[...] = jnp.zeros_like(o_ref)

    pm = pm_ref[0].astype(jnp.float32)      # (B, D)
    plv = plv_ref[0].astype(jnp.float32)    # (B, D)
    qm = qm_ref[0].astype(jnp.float32)      # (1, D)
    qlv = qlv_ref[0].astype(jnp.float32)    # (1, D)
    klc = 0.5 * (qlv - plv + jnp.exp(plv - qlv)
                 + ((pm - qm) * jnp.exp(-0.5 * qlv)) ** 2 - 1.0)
    o_ref[...] += jnp.sum(klc, keepdims=True)


# ----------------------------------------------------------------------------- launchers
def _best_width(n):
    """Largest power-of-two divisor of n capped at 128 lanes (lane-dense when n%128==0).
    TODO(synk): odd element counts degrade to narrow tiles; a manual-DMA gather kernel
                would be needed for a fully lane-dense odd-sized reduction."""
    return int(min(n & (-n), _LANES))


def _reduce_launch(kernel_body, arrays):
    """Sum-reduction of same-shaped 2D (R, C) arrays via `kernel_body` -> f32 scalar."""
    R, C = arrays[0].shape
    tile_rows = R if R <= _MAX_TILE_ROWS else _MAX_TILE_ROWS
    nrb = -(-R // tile_rows)                                  # row blocks in the array
    n_par = _PARALLEL_CHUNKS if nrb >= _PARALLEL_CHUNKS else 1
    k_steps = -(-nrb // n_par)
    needs_mask = (n_par * k_steps * tile_rows) != R
    acc_rows = 8 if (tile_rows % 8 == 0 and tile_rows > 8) else tile_rows

    kern = functools.partial(kernel_body, rows_total=R, tile_rows=tile_rows,
                             k_steps=k_steps, acc_rows=acc_rows, needs_mask=needs_mask)

    def in_map(p, k):
        # Clamp so a fully out-of-range chunk re-reads the last valid block; the
        # in-kernel row mask zeroes its contribution.
        return (jnp.minimum(p * k_steps + k, nrb - 1), 0)

    out = pl.pallas_call(
        kern,
        out_shape=jax.ShapeDtypeStruct((n_par, 1, 1), jnp.float32),
        grid=(n_par, k_steps),
        in_specs=[pl.BlockSpec((tile_rows, C), in_map) for _ in arrays],
        out_specs=pl.BlockSpec((1, 1, 1), lambda p, k: (p, 0, 0)),
        scratch_shapes=[pltpu.VMEM((acc_rows, C), jnp.float32)],
        compiler_params=pltpu.CompilerParams(
            dimension_semantics=("parallel", "arbitrary"),
            vmem_limit_bytes=_VMEM_LIMIT),
    )(*arrays)
    return jnp.sum(out)


def _sum_sq_diff(x, y):
    """sum((x - y)^2) over all elements; native-dtype streaming, f32 accumulation."""
    n = x.size
    c = _best_width(n)
    return _reduce_launch(_ssd_kernel, [x.reshape(n // c, c), y.reshape(n // c, c)])


def _sum_sq(x):
    """sum(x^2) over all elements; native-dtype streaming, f32 accumulation."""
    n = x.size
    c = _best_width(n)
    return _reduce_launch(_sumsq_kernel, [x.reshape(n // c, c)])


def _kl_sum_blocks(post_mu, post_lv, prior_mu, prior_lv):
    """post_*: (n_blocks, B, D); prior_*: (n_blocks, 1, D). Sum of all KL elements."""
    n_blocks, B, D = post_mu.shape
    out = pl.pallas_call(
        _kl_block_kernel,
        out_shape=jax.ShapeDtypeStruct((1, 1), jnp.float32),
        grid=(n_blocks,),
        in_specs=[pl.BlockSpec((1, B, D), lambda b: (b, 0, 0)),
                  pl.BlockSpec((1, B, D), lambda b: (b, 0, 0)),
                  pl.BlockSpec((1, 1, D), lambda b: (b, 0, 0)),
                  pl.BlockSpec((1, 1, D), lambda b: (b, 0, 0))],
        out_specs=pl.BlockSpec((1, 1), lambda b: (0, 0)),
        compiler_params=pltpu.CompilerParams(
            dimension_semantics=("arbitrary",),
            vmem_limit_bytes=_VMEM_LIMIT),
    )(post_mu, post_lv, prior_mu, prior_lv)
    return out[0, 0]


# ----------------------------------------------------------------------------- public math
def gaussian_loglikelihood(x, mean):
    """LogLikelihoodGaussian(x, mean) (no logvar): -mse_loss(x, mean, 'sum') / batch."""
    return -_sum_sq_diff(x, mean) / x.shape[0]


gaussian_loglikelihood.is_gaussian_sum_sq = True


def kldiv_gaussian_gaussian(post_mu, post_lv, prior_mu, prior_lv):
    """KL(post || prior), mean over batch dim 0, sum over feature dim."""
    B = post_mu.shape[0]
    return _kl_sum_blocks(post_mu[None], post_lv[None],
                          prior_mu.reshape(1, 1, -1), prior_lv.reshape(1, 1, -1)) / B


# ----------------------------------------------------------------------------- model stand-in
class GRUCellParams:
    def __init__(self, w_ru, w_c):
        self.w_ru = w_ru  # [H, 2H] hidden->reset/update weights
        self.w_c = w_c    # [H, H]  hidden->candidate weights

    def hidden_weights(self):
        return [self.w_ru, self.w_c]

    def hidden_weight_l2_norm(self):
        # sum over hidden-weight matrices of mean(w^2) -- consistent with the fused
        # L2 path in Multiblock_LFADS_Loss_Allblocks.forward.
        parts = [w.reshape(-1).astype(jnp.float32) / jnp.sqrt(jnp.float32(w.size))
                 for w in self.hidden_weights()]
        return _sum_sq(jnp.concatenate(parts))


class Generator:
    def __init__(self, gru):
        self.gru_generator = gru


class Controller:
    def __init__(self, gru):
        self.gru_controller = gru


class LFADSBlock:
    def __init__(self, post_mu, post_lv, prior_mu, prior_lv, gen_gru, con_gru=None):
        self.g_posterior_mean = post_mu
        self.g_posterior_logvar = post_lv
        self.g_prior_mean = prior_mu
        self.g_prior_logvar = prior_lv
        self.generator = Generator(gen_gru)
        if con_gru is not None:
            self.controller = Controller(con_gru)

    def kl_div(self):
        return kldiv_gaussian_gaussian(self.g_posterior_mean, self.g_posterior_logvar,
                                       self.g_prior_mean, self.g_prior_logvar)


class Model:
    def __init__(self, blocks):
        self.lfads_blocks = blocks


# ----------------------------------------------------------------------------- jitted numeric path
def _loss_impl_fn(x_orig, x_recon_data, x_block, x_block_out, recon_precomputed,
                  post_mu, post_lv, prior_mu, prior_lv,
                  gen_weights, con_weights,
                  kl_weight, l2_gen_coeff, l2_con_coeff,
                  *, fuse_recon, use_tdl, compute_kl, compute_l2):
    # ---- reconstruction ---------------------------------------------------------
    if fuse_recon:
        recon = _sum_sq_diff(x_orig, x_recon_data) / x_orig.shape[0]
        if len(x_block) > 0:
            same = (all(b.shape == x_block[0].shape for b in x_block)
                    and tuple(x_block_out.shape)
                    == tuple(x_block[0].shape) + (len(x_block),))
            if same:
                # Stack along the LAST axis: matches x_block_out's native layout, so
                # the big prediction tensor needs no transpose/moveaxis pass.
                xb = jnp.stack(x_block, axis=-1)
                recon = recon + _sum_sq_diff(xb, x_block_out) / x_block[0].shape[0]
            else:
                for i, xb in enumerate(x_block):
                    recon = recon + _sum_sq_diff(xb, x_block_out[..., i]) / xb.shape[0]
    else:
        recon = jnp.asarray(recon_precomputed, jnp.float32)

    # ---- KL (skipped entirely when the schedule weight is zero) ------------------
    kl = jnp.float32(0.0)
    if compute_kl:
        if len({m.shape for m in post_mu}) == 1:
            pm = jnp.stack(post_mu, axis=0)                      # (n, B, D) tiny copy
            plv = jnp.stack(post_lv, axis=0)
            qm = jnp.stack([q.reshape(1, -1) for q in prior_mu], axis=0)   # (n, 1, D)
            qlv = jnp.stack([q.reshape(1, -1) for q in prior_lv], axis=0)
            kl = _kl_sum_blocks(pm, plv, qm, qlv) / pm.shape[1]
        else:
            for m, lv, q, qv in zip(post_mu, post_lv, prior_mu, prior_lv):
                kl = kl + kldiv_gaussian_gaussian(m, lv, q, qv)
        kl = kl_weight * kl

    # ---- L2 over all GRU hidden weights: one fused launch -------------------------
    l2 = jnp.float32(0.0)
    if compute_l2:
        parts = [w.reshape(-1).astype(jnp.float32) * jnp.sqrt(l2_gen_coeff / w.size)
                 for w in gen_weights]
        parts += [w.reshape(-1).astype(jnp.float32) * jnp.sqrt(l2_con_coeff / w.size)
                  for w in con_weights]
        l2 = _sum_sq(jnp.concatenate(parts))

    loss = kl + l2
    if use_tdl:
        loss = loss + recon

    stats = jnp.stack([jnp.asarray(kl, jnp.float32), jnp.asarray(l2, jnp.float32),
                       jnp.asarray(recon, jnp.float32), jnp.asarray(loss, jnp.float32)])
    return loss, stats


_loss_impl = jax.jit(
    _loss_impl_fn,
    static_argnames=("fuse_recon", "use_tdl", "compute_kl", "compute_l2"))


# ----------------------------------------------------------------------------- loss module
class Base_Loss:
    def __init__(self, loss_weight_dict, l2_gen_scale=0.0, l2_con_scale=0.0):
        self.loss_weights = loss_weight_dict
        self.l2_gen_scale = l2_gen_scale
        self.l2_con_scale = l2_con_scale

    def weight_schedule_fn(self, step):
        for key in self.loss_weights.keys():
            weight_step = max(step - self.loss_weights[key]['schedule_start'], 0)
            self.loss_weights[key]['weight'] = max(
                min(self.loss_weights[key]['max'] * weight_step /
                    self.loss_weights[key]['schedule_dur'],
                    self.loss_weights[key]['max']),
                self.loss_weights[key]['min'])

    def any_zero_weights(self):
        for key, val in self.loss_weights.items():
            if val['weight'] == 0:
                return True
        return False


class Multiblock_LFADS_Loss_Allblocks(Base_Loss):
    def __init__(self, loglikelihood, use_fdl=False, use_tdl=True,
                 loss_weight_dict={'kl': {'weight': 0.0, 'schedule_dur': 2000,
                                          'schedule_start': 0, 'max': 1.0, 'min': 0.0},
                                   'l2': {'weight': 0.0, 'schedule_dur': 2000,
                                          'schedule_start': 0, 'max': 1.0, 'min': 0.0}},
                 l2_con_scale=0.0, l2_gen_scale=0.0):
        super().__init__(loss_weight_dict=loss_weight_dict,
                         l2_con_scale=l2_con_scale, l2_gen_scale=l2_gen_scale)
        self.loglikelihood = loglikelihood
        self.use_fdl = use_fdl
        self.use_tdl = use_tdl

    def forward(self, x_block, x_orig, x_block_out, x_recon, model):
        if self.use_fdl:
            # TODO(synk): freq_domain_loss needs torch.fft.rfft; no Pallas FFT available.
            raise NotImplementedError("use_fdl / freq_domain_loss not implemented")

        kl_weight = float(self.loss_weights['kl']['weight'])
        l2_weight = float(self.loss_weights['l2']['weight'])
        blocks = list(model.lfads_blocks)

        fused = (self.loglikelihood is gaussian_loglikelihood
                 or getattr(self.loglikelihood, 'is_gaussian_sum_sq', False))

        # Non-Gaussian loglikelihoods fall back to direct evaluation (slow path).
        recon_pre = 0.0
        if not fused:
            recon_pre = -self.loglikelihood(x_orig, x_recon['data'])
            for b_idx in range(len(x_block)):
                recon_pre = recon_pre - self.loglikelihood(
                    x_block[b_idx], x_block_out[:, :, :, b_idx])

        compute_kl = (kl_weight != 0.0) and len(blocks) > 0
        post_mu = tuple(b.g_posterior_mean for b in blocks) if compute_kl else ()
        post_lv = tuple(b.g_posterior_logvar for b in blocks) if compute_kl else ()
        prior_mu = tuple(b.g_prior_mean for b in blocks) if compute_kl else ()
        prior_lv = tuple(b.g_prior_logvar for b in blocks) if compute_kl else ()

        gen_w, con_w = [], []
        if l2_weight != 0.0:
            for lb in blocks:
                if self.l2_gen_scale != 0.0:
                    gen_w += lb.generator.gru_generator.hidden_weights()
                if self.l2_con_scale != 0.0 and hasattr(lb, 'controller'):
                    con_w += lb.controller.gru_controller.hidden_weights()
        compute_l2 = bool(gen_w or con_w)

        loss, stats = _loss_impl(
            x_orig, x_recon['data'], tuple(x_block), x_block_out, recon_pre,
            post_mu, post_lv, prior_mu, prior_lv,
            tuple(gen_w), tuple(con_w),
            kl_weight,
            0.5 * l2_weight * self.l2_gen_scale,
            0.5 * l2_weight * self.l2_con_scale,
            fuse_recon=fused, use_tdl=self.use_tdl,
            compute_kl=compute_kl, compute_l2=compute_l2)

        # Single stacked device->host transfer for the logging dict.
        # TODO(synk): in a real training loop fetch this on a logging cadence only.
        kl_v, l2_v, recon_v, total_v = (float(v) for v in jax.device_get(stats))
        loss_dict = {'kl': kl_v, 'l2': l2_v}
        if self.use_tdl:
            loss_dict['recon'] = recon_v
        loss_dict['total'] = total_v
        return loss, loss_dict


# ----------------------------------------------------------------------------- pure-JAX reference
def _reference_loss(x_block, x_orig, x_block_out, x_recon_data, blocks,
                    kl_weight, l2_weight, l2_gen_scale, l2_con_scale):
    B = x_orig.shape[0]
    sq = lambda a, b: jnp.sum((a - b) ** 2)
    recon = sq(x_orig, x_recon_data) / B
    for b in range(len(x_block)):
        recon += sq(x_block[b], x_block_out[..., b]) / B
    kl = 0.0
    l2 = 0.0
    for blk in blocks:
        pm, plv = blk.g_posterior_mean, blk.g_posterior_logvar
        qm, qlv = blk.g_prior_mean, blk.g_prior_logvar
        klc = 0.5 * (qlv - plv + jnp.exp(plv - qlv)
                     + ((pm - qm) * jnp.exp(-0.5 * qlv)) ** 2 - 1.0)
        kl += kl_weight * jnp.sum(jnp.mean(klc, axis=0))
        gen = blk.generator.gru_generator
        l2 += 0.5 * l2_weight * l2_gen_scale * (
            jnp.sum(gen.w_ru ** 2) / gen.w_ru.size + jnp.sum(gen.w_c ** 2) / gen.w_c.size)
        con = blk.controller.gru_controller
        l2 += 0.5 * l2_weight * l2_con_scale * (
            jnp.sum(con.w_ru ** 2) / con.w_ru.size + jnp.sum(con.w_c ** 2) / con.w_c.size)
    return kl + l2 + recon


# ----------------------------------------------------------------------------- main
if __name__ == "__main__":
    key = jax.random.PRNGKey(0)
    B, T, n_blocks, C_blk = 2, 16, 2, 12
    C_full = n_blocks * C_blk
    g0_dim, gen_dim, con_dim = 64, 32, 16

    keys = iter(jax.random.split(key, 64))
    nrm = lambda shape, scale=1.0: scale * jax.random.normal(next(keys), shape, jnp.float32)

    x_orig = nrm((B, T, C_full))
    x_recon = {'data': nrm((B, T, C_full))}
    x_block = [nrm((B, T, C_blk)) for _ in range(n_blocks)]
    x_block_out = nrm((B, T, C_blk, n_blocks))

    blocks = []
    for _ in range(n_blocks):
        blocks.append(LFADSBlock(
            post_mu=nrm((B, g0_dim)),
            post_lv=nrm((B, g0_dim), 0.1),
            prior_mu=nrm((1, g0_dim), 0.1),
            prior_lv=nrm((1, g0_dim), 0.1),
            gen_gru=GRUCellParams(nrm((gen_dim, 2 * gen_dim), 0.1),
                                  nrm((gen_dim, gen_dim), 0.1)),
            con_gru=GRUCellParams(nrm((con_dim, 2 * con_dim), 0.1),
                                  nrm((con_dim, con_dim), 0.1)),
        ))
    model = Model(blocks)

    objective = Multiblock_LFADS_Loss_Allblocks(
        loglikelihood=gaussian_loglikelihood,
        use_fdl=False, use_tdl=True,
        l2_gen_scale=1.0, l2_con_scale=1.0)
    objective.weight_schedule_fn(1000)  # kl/l2 weight -> 0.5 each, deterministic

    loss, loss_dict = objective.forward(x_block, x_orig, x_block_out, x_recon, model)
    loss = jax.block_until_ready(loss)

    ref = _reference_loss(x_block, x_orig, x_block_out, x_recon['data'], blocks,
                          objective.loss_weights['kl']['weight'],
                          objective.loss_weights['l2']['weight'],
                          objective.l2_gen_scale, objective.l2_con_scale)
    ref = float(jax.block_until_ready(ref))

    assert abs(float(loss) - ref) <= 1e-3 + 1e-4 * abs(ref), (float(loss), ref, loss_dict)
    print("KERNEL_OK")
</pallas_src>

<mosaic_0001>
module attributes {stable_mosaic.version = 11 : i64} {
  func.func @_kl_block_kernel(%arg0: i32, %arg1: memref<1x2x64xf32, #tpu.memory_space<vmem>>, %arg2: memref<1x2x64xf32, #tpu.memory_space<vmem>>, %arg3: memref<1x1x64xf32, #tpu.memory_space<vmem>>, %arg4: memref<1x1x64xf32, #tpu.memory_space<vmem>>, %arg5: memref<1x1xf32, #tpu.memory_space<vmem>>) attributes {dimension_semantics = [#tpu.dimension_semantics<arbitrary>], iteration_bounds = array<i64: 2>, scalar_prefetch = 0 : i64, scratch_operands = 0 : i64, tpu.core_type = #tpu.core_type<tc>, window_params = [{transform_indices = @transform_0, window_bounds = array<i64: 1, 2, 64>}, {transform_indices = @transform_1, window_bounds = array<i64: 1, 2, 64>}, {transform_indices = @transform_2, window_bounds = array<i64: 1, 1, 64>}, {transform_indices = @transform_3, window_bounds = array<i64: 1, 1, 64>}, {pipeline_mode = #tpu.pipeline_mode<synchronous>, transform_indices = @transform_4, window_bounds = array<i64: 1, 1>}]} {
    %c0_i32 = arith.constant 0 : i32
    %0 = arith.cmpi eq, %arg0, %c0_i32 : i32
    %1 = arith.extui %0 : i1 to i32
    %c0_i32_0 = arith.constant 0 : i32
    %2 = arith.cmpi ne, %1, %c0_i32_0 : i32
    scf.if %2 {
      %cst_19 = arith.constant 0.000000e+00 : f32
      %38 = vector.broadcast %cst_19 : f32 to vector<1x1xf32>
      %c0_20 = arith.constant 0 : index
      %c0_21 = arith.constant 0 : index
      %39 = vector.load %arg5[%c0_20, %c0_21] : memref<1x1xf32, #tpu.memory_space<vmem>>, vector<1x1xf32>
      tpu.vector_store %arg5[%c0_20, %c0_21], %38 {strides = array<i32>} : memref<1x1xf32, #tpu.memory_space<vmem>>, vector<1x1xf32>,
    } else {
    }
    %c0 = arith.constant 0 : index
    %c0_1 = arith.constant 0 : index
    %c0_2 = arith.constant 0 : index
    %3 = vector.load %arg1[%c0, %c0_1, %c0_2] : memref<1x2x64xf32, #tpu.memory_space<vmem>>, vector<1x2x64xf32>
    %4 = vector.shape_cast %3 : vector<1x2x64xf32> to vector<2x64xf32>
    %c0_3 = arith.constant 0 : index
    %c0_4 = arith.constant 0 : index
    %c0_5 = arith.constant 0 : index
    %5 = vector.load %arg2[%c0_3, %c0_4, %c0_5] : memref<1x2x64xf32, #tpu.memory_space<vmem>>, vector<1x2x64xf32>
    %6 = vector.shape_cast %5 : vector<1x2x64xf32> to vector<2x64xf32>
    %c0_6 = arith.constant 0 : index
    %c0_7 = arith.constant 0 : index
    %c0_8 = arith.constant 0 : index
    %7 = vector.load %arg3[%c0_6, %c0_7, %c0_8] : memref<1x1x64xf32, #tpu.memory_space<vmem>>, vector<1x1x64xf32>
    %8 = vector.shape_cast %7 : vector<1x1x64xf32> to vector<1x64xf32>
    %c0_9 = arith.constant 0 : index
    %c0_10 = arith.constant 0 : index
    %c0_11 = arith.constant 0 : index
    %9 = vector.load %arg4[%c0_9, %c0_10, %c0_11] : memref<1x1x64xf32, #tpu.memory_space<vmem>>, vector<1x1x64xf32>
    %10 = vector.shape_cast %9 : vector<1x1x64xf32> to vector<1x64xf32>
    %11 = vector.broadcast %10 : vector<1x64xf32> to vector<2x64xf32>
    %12 = arith.subf %11, %6 : vector<2x64xf32>
    %13 = vector.broadcast %10 : vector<1x64xf32> to vector<2x64xf32>
    %14 = arith.subf %6, %13 : vector<2x64xf32>
    %15 = math.exp %14 : vector<2x64xf32>
    %16 = arith.addf %12, %15 : vector<2x64xf32>
    %17 = vector.broadcast %8 : vector<1x64xf32> to vector<2x64xf32>
    %18 = arith.subf %4, %17 : vector<2x64xf32>
    %cst = arith.constant -5.000000e-01 : f32
    %19 = vector.broadcast %cst : f32 to vector<1x64xf32>
    %20 = arith.mulf %19, %10 : vector<1x64xf32>
    %21 = math.exp %20 : vector<1x64xf32>
    %22 = vector.broadcast %21 : vector<1x64xf32> to vector<2x64xf32>
    %23 = arith.mulf %18, %22 : vector<2x64xf32>
    %24 = arith.mulf %23, %23 : vector<2x64xf32>
    %25 = arith.addf %16, %24 : vector<2x64xf32>
    %cst_12 = arith.constant 1.000000e+00 : f32
    %26 = vector.broadcast %cst_12 : f32 to vector<2x64xf32>
    %27 = arith.subf %25, %26 : vector<2x64xf32>
    %cst_13 = arith.constant 5.000000e-01 : f32
    %28 = vector.broadcast %cst_13 : f32 to vector<2x64xf32>
    %29 = arith.mulf %28, %27 : vector<2x64xf32>
    %c0_14 = arith.constant 0 : index
    %c0_15 = arith.constant 0 : index
    %30 = vector.load %arg5[%c0_14, %c0_15] : memref<1x1xf32, #tpu.memory_space<vmem>>, vector<1x1xf32>
    %31 = vector.shape_cast %29 : vector<2x64xf32> to vector<1x2x64xf32>
    %cst_16 = arith.constant dense<0.000000e+00> : vector<1xf32>
    %32 = vector.multi_reduction <add>, %31, %cst_16 [1, 2] : vector<1x2x64xf32> to vector<1xf32>
    %33 = vector.shape_cast %32 : vector<1xf32> to vector<1x1x1xf32>
    %34 = vector.extract %33[0, 0, 0] : f32 from vector<1x1x1xf32>
    %35 = vector.broadcast %34 : f32 to vector<1x1xf32>
    %36 = arith.addf %30, %35 : vector<1x1xf32>
    %c0_17 = arith.constant 0 : index
    %c0_18 = arith.constant 0 : index
    %37 = vector.load %arg5[%c0_17, %c0_18] : memref<1x1xf32, #tpu.memory_space<vmem>>, vector<1x1xf32>
    tpu.vector_store %arg5[%c0_17, %c0_18], %36 {strides = array<i32>} : memref<1x1xf32, #tpu.memory_space<vmem>>, vector<1x1xf32>,
    return
  }
  func.func @transform_0(%arg0: i32) -> (i32, i32, i32) {
    %c0_i32 = arith.constant 0 : i32
    %c0_i32_0 = arith.constant 0 : i32
    %c0_i32_1 = arith.constant 0 : i32
    return %arg0, %c0_i32, %c0_i32_0 : i32, i32, i32
  }
  func.func @transform_1(%arg0: i32) -> (i32, i32, i32) {
    %c0_i32 = arith.constant 0 : i32
    %c0_i32_0 = arith.constant 0 : i32
    %c0_i32_1 = arith.constant 0 : i32
    return %arg0, %c0_i32, %c0_i32_0 : i32, i32, i32
  }
  func.func @transform_2(%arg0: i32) -> (i32, i32, i32) {
    %c0_i32 = arith.constant 0 : i32
    %c0_i32_0 = arith.constant 0 : i32
    %c0_i32_1 = arith.constant 0 : i32
    return %arg0, %c0_i32, %c0_i32_0 : i32, i32, i32
  }
  func.func @transform_3(%arg0: i32) -> (i32, i32, i32) {
    %c0_i32 = arith.constant 0 : i32
    %c0_i32_0 = arith.constant 0 : i32
    %c0_i32_1 = arith.constant 0 : i32
    return %arg0, %c0_i32, %c0_i32_0 : i32, i32, i32
  }
  func.func @transform_4(%arg0: i32) -> (i32, i32) {
    %c0_i32 = arith.constant 0 : i32
    %c0_i32_0 = arith.constant 0 : i32
    %c0_i32_1 = arith.constant 0 : i32
    return %c0_i32, %c0_i32_0 : i32, i32
  }
}

module attributes {stable_mosaic.version = 11 : i64} {
  func.func @_sumsq_kernel(%arg0: i32, %arg1: i32, %arg2: memref<60x128xf32, #tpu.memory_space<vmem>>, %arg3: memref<1x1x1xf32, #tpu.memory_space<vmem>>, %arg4: memref<60x128xf32, #tpu.memory_space<vmem>>) attributes {dimension_semantics = [#tpu.dimension_semantics<parallel>, #tpu.dimension_semantics<arbitrary>], iteration_bounds = array<i64: 1, 1>, scalar_prefetch = 0 : i64, scratch_operands = 1 : i64, tpu.core_type = #tpu.core_type<tc>, window_params = [{transform_indices = @transform_0, window_bounds = array<i64: 60, 128>}, {transform_indices = @transform_1, window_bounds = array<i64: 1, 1, 1>}]} {
    %c0_i32 = arith.constant 0 : i32
    %0 = arith.cmpi eq, %arg1, %c0_i32 : i32
    %1 = arith.extui %0 : i1 to i32
    %c0_i32_0 = arith.constant 0 : i32
    %2 = arith.cmpi ne, %1, %c0_i32_0 : i32
    scf.if %2 {
      %cst = arith.constant 0.000000e+00 : f32
      %11 = vector.broadcast %cst : f32 to vector<60x128xf32>
      %c0_8 = arith.constant 0 : index
      %c0_9 = arith.constant 0 : index
      %12 = vector.load %arg4[%c0_8, %c0_9] : memref<60x128xf32, #tpu.memory_space<vmem>>, vector<60x128xf32>
      tpu.vector_store %arg4[%c0_8, %c0_9], %11 {strides = array<i32>} : memref<60x128xf32, #tpu.memory_space<vmem>>, vector<60x128xf32>,
    } else {
    }
    %c0 = arith.constant 0 : index
    %c0_1 = arith.constant 0 : index
    %3 = vector.load %arg2[%c0, %c0_1] : memref<60x128xf32, #tpu.memory_space<vmem>>, vector<60x128xf32>
    %c0_2 = arith.constant 0 : index
    %c0_3 = arith.constant 0 : index
    %4 = vector.load %arg4[%c0_2, %c0_3] : memref<60x128xf32, #tpu.memory_space<vmem>>, vector<60x128xf32>
    %5 = arith.mulf %3, %3 : vector<60x128xf32>
    %6 = arith.addf %4, %5 : vector<60x128xf32>
    %c0_4 = arith.constant 0 : index
    %c0_5 = arith.constant 0 : index
    %7 = vector.load %arg4[%c0_4, %c0_5] : memref<60x128xf32, #tpu.memory_space<vmem>>, vector<60x128xf32>
    tpu.vector_store %arg4[%c0_4, %c0_5], %6 {strides = array<i32>} : memref<60x128xf32, #tpu.memory_space<vmem>>, vector<60x128xf32>,
    %c0_i32_6 = arith.constant 0 : i32
    %8 = arith.cmpi eq, %arg1, %c0_i32_6 : i32
    %9 = arith.extui %8 : i1 to i32
    %c0_i32_7 = arith.constant 0 : i32
    %10 = arith.cmpi ne, %9, %c0_i32_7 : i32
    scf.if %10 {
      %c0_8 = arith.constant 0 : index
      %c0_9 = arith.constant 0 : index
      %11 = vector.load %arg4[%c0_8, %c0_9] : memref<60x128xf32, #tpu.memory_space<vmem>>, vector<60x128xf32>
      %12 = vector.shape_cast %11 : vector<60x128xf32> to vector<1x60x128xf32>
      %cst = arith.constant dense<0.000000e+00> : vector<1xf32>
      %13 = vector.multi_reduction <add>, %12, %cst [1, 2] : vector<1x60x128xf32> to vector<1xf32>
      %14 = vector.shape_cast %13 : vector<1xf32> to vector<1x1x1xf32>
      %15 = vector.extract %14[0, 0, 0] : f32 from vector<1x1x1xf32>
      %16 = vector.broadcast %15 : f32 to vector<1x1xf32>
      %17 = vector.shape_cast %16 : vector<1x1xf32> to vector<1x1x1xf32>
      %c0_10 = arith.constant 0 : index
      %c0_11 = arith.constant 0 : index
      %c0_12 = arith.constant 0 : index
      %18 = vector.load %arg3[%c0_10, %c0_11, %c0_12] : memref<1x1x1xf32, #tpu.memory_space<vmem>>, vector<1x1x1xf32>
      tpu.vector_store %arg3[%c0_10, %c0_11, %c0_12], %17 {strides = array<i32>} : memref<1x1x1xf32, #tpu.memory_space<vmem>>, vector<1x1x1xf32>,
    } else {
    }
    return
  }
  func.func @transform_0(%arg0: i32, %arg1: i32) -> (i32, i32) {
    %c1_i32 = arith.constant 1 : i32
    %0 = arith.muli %arg0, %c1_i32 : i32
    %1 = arith.addi %0, %arg1 : i32
    %c0_i32 = arith.constant 0 : i32
    %2 = arith.minsi %1, %c0_i32 : i32
    %c0_i32_0 = arith.constant 0 : i32
    %c0_i32_1 = arith.constant 0 : i32
    return %2, %c0_i32_0 : i32, i32
  }
  func.func @transform_1(%arg0: i32, %arg1: i32) -> (i32, i32, i32) {
    %c0_i32 = arith.constant 0 : i32
    %c0_i32_0 = arith.constant 0 : i32
    %c0_i32_1 = arith.constant 0 : i32
    return %arg0, %c0_i32, %c0_i32_0 : i32, i32, i32
  }
}

module attributes {stable_mosaic.version = 11 : i64} {
  func.func @_ssd_kernel(%arg0: i32, %arg1: i32, %arg2: memref<6x128xf32, #tpu.memory_space<vmem>>, %arg3: memref<6x128xf32, #tpu.memory_space<vmem>>, %arg4: memref<1x1x1xf32, #tpu.memory_space<vmem>>, %arg5: memref<6x128xf32, #tpu.memory_space<vmem>>) attributes {dimension_semantics = [#tpu.dimension_semantics<parallel>, #tpu.dimension_semantics<arbitrary>], iteration_bounds = array<i64: 1, 1>, scalar_prefetch = 0 : i64, scratch_operands = 1 : i64, tpu.core_type = #tpu.core_type<tc>, window_params = [{transform_indices = @transform_0, window_bounds = array<i64: 6, 128>}, {transform_indices = @transform_1, window_bounds = array<i64: 6, 128>}, {transform_indices = @transform_2, window_bounds = array<i64: 1, 1, 1>}]} {
    %c0_i32 = arith.constant 0 : i32
    %0 = arith.cmpi eq, %arg1, %c0_i32 : i32
    %1 = arith.extui %0 : i1 to i32
    %c0_i32_0 = arith.constant 0 : i32
    %2 = arith.cmpi ne, %1, %c0_i32_0 : i32
    scf.if %2 {
      %cst = arith.constant 0.000000e+00 : f32
      %13 = vector.broadcast %cst : f32 to vector<6x128xf32>
      %c0_10 = arith.constant 0 : index
      %c0_11 = arith.constant 0 : index
      %14 = vector.load %arg5[%c0_10, %c0_11] : memref<6x128xf32, #tpu.memory_space<vmem>>, vector<6x128xf32>
      tpu.vector_store %arg5[%c0_10, %c0_11], %13 {strides = array<i32>} : memref<6x128xf32, #tpu.memory_space<vmem>>, vector<6x128xf32>,
    } else {
    }
    %c0 = arith.constant 0 : index
    %c0_1 = arith.constant 0 : index
    %3 = vector.load %arg2[%c0, %c0_1] : memref<6x128xf32, #tpu.memory_space<vmem>>, vector<6x128xf32>
    %c0_2 = arith.constant 0 : index
    %c0_3 = arith.constant 0 : index
    %4 = vector.load %arg3[%c0_2, %c0_3] : memref<6x128xf32, #tpu.memory_space<vmem>>, vector<6x128xf32>
    %5 = arith.subf %3, %4 : vector<6x128xf32>
    %c0_4 = arith.constant 0 : index
    %c0_5 = arith.constant 0 : index
    %6 = vector.load %arg5[%c0_4, %c0_5] : memref<6x128xf32, #tpu.memory_space<vmem>>, vector<6x128xf32>
    %7 = arith.mulf %5, %5 : vector<6x128xf32>
    %8 = arith.addf %6, %7 : vector<6x128xf32>
    %c0_6 = arith.constant 0 : index
    %c0_7 = arith.constant 0 : index
    %9 = vector.load %arg5[%c0_6, %c0_7] : memref<6x128xf32, #tpu.memory_space<vmem>>, vector<6x128xf32>
    tpu.vector_store %arg5[%c0_6, %c0_7], %8 {strides = array<i32>} : memref<6x128xf32, #tpu.memory_space<vmem>>, vector<6x128xf32>,
    %c0_i32_8 = arith.constant 0 : i32
    %10 = arith.cmpi eq, %arg1, %c0_i32_8 : i32
    %11 = arith.extui %10 : i1 to i32
    %c0_i32_9 = arith.constant 0 : i32
    %12 = arith.cmpi ne, %11, %c0_i32_9 : i32
    scf.if %12 {
      %c0_10 = arith.constant 0 : index
      %c0_11 = arith.constant 0 : index
      %13 = vector.load %arg5[%c0_10, %c0_11] : memref<6x128xf32, #tpu.memory_space<vmem>>, vector<6x128xf32>
      %14 = vector.shape_cast %13 : vector<6x128xf32> to vector<1x6x128xf32>
      %cst = arith.constant dense<0.000000e+00> : vector<1xf32>
      %15 = vector.multi_reduction <add>, %14, %cst [1, 2] : vector<1x6x128xf32> to vector<1xf32>
      %16 = vector.shape_cast %15 : vector<1xf32> to vector<1x1x1xf32>
      %17 = vector.extract %16[0, 0, 0] : f32 from vector<1x1x1xf32>
      %18 = vector.broadcast %17 : f32 to vector<1x1xf32>
      %19 = vector.shape_cast %18 : vector<1x1xf32> to vector<1x1x1xf32>
      %c0_12 = arith.constant 0 : index
      %c0_13 = arith.constant 0 : index
      %c0_14 = arith.constant 0 : index
      %20 = vector.load %arg4[%c0_12, %c0_13, %c0_14] : memref<1x1x1xf32, #tpu.memory_space<vmem>>, vector<1x1x1xf32>
      tpu.vector_store %arg4[%c0_12, %c0_13, %c0_14], %19 {strides = array<i32>} : memref<1x1x1xf32, #tpu.memory_space<vmem>>, vector<1x1x1xf32>,
    } else {
    }
    return
  }
  func.func @transform_0(%arg0: i32, %arg1: i32) -> (i32, i32) {
    %c1_i32 = arith.constant 1 : i32
    %0 = arith.muli %arg0, %c1_i32 : i32
    %1 = arith.addi %0, %arg1 : i32
    %c0_i32 = arith.constant 0 : i32
    %2 = arith.minsi %1, %c0_i32 : i32
    %c0_i32_0 = arith.constant 0 : i32
    %c0_i32_1 = arith.constant 0 : i32
    return %2, %c0_i32_0 : i32, i32
  }
  func.func @transform_1(%arg0: i32, %arg1: i32) -> (i32, i32) {
    %c1_i32 = arith.constant 1 : i32
    %0 = arith.muli %arg0, %c1_i32 : i32
    %1 = arith.addi %0, %arg1 : i32
    %c0_i32 = arith.constant 0 : i32
    %2 = arith.minsi %1, %c0_i32 : i32
    %c0_i32_0 = arith.constant 0 : i32
    %c0_i32_1 = arith.constant 0 : i32
    return %2, %c0_i32_0 : i32, i32
  }
  func.func @transform_2(%arg0: i32, %arg1: i32) -> (i32, i32, i32) {
    %c0_i32 = arith.constant 0 : i32
    %c0_i32_0 = arith.constant 0 : i32
    %c0_i32_1 = arith.constant 0 : i32
    return %arg0, %c0_i32, %c0_i32_0 : i32, i32, i32
  }
}

</mosaic_0001>

<llo_original>
// kernel: _loss_impl_fn.7
$region0: #{_loss_impl_fn.7}
  #allocation0 [shape = 'u32[]', space=smem, size = 0x4, offset = 0x4, fixed_abs, tag = 'smem constant byte address 0x4 - core index']
  #allocation1 [shape = 'u32[144,128]{1,0:T(1,128)}', space=vmem, size = 0x12000, scoped, tag = 'internal scratch']
  #allocation2 [shape = 'f32[60,128]{1,0:T(8,128)}', space=vmem, size = 0x8000, scoped, tag = 'scratch operand']
  %s0 = inlined_call_operand.vmem [shape: f32[60,128], index: 0, kind: input, shape index: {}]
  %s1 = inlined_call_operand.hbm [shape: f32[1,1,1], index: 1, kind: output, shape index: {}]
  %s2 = sld [smem:[#allocation0]]
  $region22: #{_loss_impl_fn.7} parent=0
    _
  %s4 = ssub.s32 1, %s2
  %s5 = scalar_select 0, %s4, %s2
  $region1: #{_loss_impl_fn.7} parent=0
    #allocation3 [shape = 'u8[512]{0}', space=vmem, size = 0x400, scoped, tag = 'output window, operand 0, single buffered']
    #allocation4 [shape = 's32[1]{0}', space=sflag, size = 0x4, scoped, tag = 'scoped memory for _loss_impl_fn.7']
    %6 = vsyncpa [#allocation4], 0
    // Predicated region
    $region2: #{_loss_impl_fn.7} parent=1 // pred_check
      _
    $region3: #{_loss_impl_fn.7} parent=1 // pred_check_branch
      %8 = sbr.rel (0) target = $region5
    $region4: #{_loss_impl_fn.7} parent=1 // pred_region
      %s9 = sadd.s32 0, 0
      %p10 = scmp.lt.s32.totalorder %s9, 0
      %s11 = scalar_select %p10, %s9, 0
      %s12 = smul.u32 8, %s11
      %p13 = scmp.lt.s32.totalorder %s12, 7
      %s14 = scalar_select %p13, %s12, 7
      %s15 = smul.addr %s14, 8
      %s16 = scalar_lea.vmem %s0, %s15
      %s17 = sadd.s32 0, 0
      %p18 = scmp.lt.s32.totalorder %s17, 0
      %s19 = scalar_select %p18, %s17, 0
      %s20 = smul.u32 8, %s19
    $region5: #{_loss_impl_fn.7} parent=1 // pred_fallthru
      _
    %s21 = sadd.s32 0, 0
    %p22 = scmp.lt.s32.totalorder %s21, 0
    %s23 = scalar_select %p22, %s21, 0
    %s24 = smul.u32 8, %s23
    %p25 = scmp.lt.s32.totalorder %s24, 7
    %s26 = scalar_select %p25, %s24, 7
    %s27 = smul.addr %s26, 8
    %s28 = scalar_lea.vmem %s0, %s27
    %s29 = sadd.s32 0, 0
    %p30 = scmp.lt.s32.totalorder %s29, 0
    %s31 = scalar_select %p30, %s29, 0
    %s32 = smul.u32 8, %s31
    %p33 = scmp.lt.s32.totalorder %s32, 7
    %s34 = scalar_select %p33, %s32, 7
    %s35 = smul.addr %s34, 8
    %s36 = scalar_lea.vmem %s0, %s35
    %s37 = sadd.s32 0, 0
    %p38 = scmp.lt.s32.totalorder %s37, 0
    %s39 = scalar_select %p38, %s37, 0
    %s40 = smul.u32 8, %s39
    %p41 = scmp.eq.s32.totalorder 0, 0
    // Predicated region
    $region6: #{_loss_impl_fn.7} parent=1 // pred_check
      %p42 = pneg %p41
    $region7: #{_loss_impl_fn.7} parent=1 // pred_check_branch
      %44 = sbr.rel (%p42) target = $region9
    $region8: #{_loss_impl_fn.7} parent=1 // pred_region
      %45 = vst [vmem:[#allocation2] sm:$0xff] 0.0
      %46 = vst [vmem:[#allocation2 + $0x8] sm:$0xff] 0.0
      %47 = vst [vmem:[#allocation2 + $0x10] sm:$0xff] 0.0
      %48 = vst [vmem:[#allocation2 + $0x18] sm:$0xff] 0.0
      %49 = vst [vmem:[#allocation2 + $0x20] sm:$0xff] 0.0
      %50 = vst [vmem:[#allocation2 + $0x28] sm:$0xff] 0.0
      %51 = vst [vmem:[#allocation2 + $0x30] sm:$0xff] 0.0
      %52 = vst [vmem:[#allocation2 + $0x38] sm:$0xf] 0.0
    $region9: #{_loss_impl_fn.7} parent=1 // pred_fallthru
      _
    %v53 = vld [vmem:[%s36] sm:$0xff]
    %v54 = vld [vmem:[%s36 + $0x8] sm:$0xff]
    %v55 = vld [vmem:[%s36 + $0x10] sm:$0xff]
    %v56 = vld [vmem:[%s36 + $0x18] sm:$0xff]
    %v57 = vld [vmem:[%s36 + $0x20] sm:$0xff]
    %v58 = vld [vmem:[%s36 + $0x28] sm:$0xff]
    %v59 = vld [vmem:[%s36 + $0x30] sm:$0xff]
    %v60 = vld [vmem:[%s36 + $0x38] sm:$0xf]
    %v61 = vld [vmem:[#allocation2] sm:$0xff]
    %v62 = vld [vmem:[#allocation2 + $0x8] sm:$0xff]
    %v63 = vld [vmem:[#allocation2 + $0x10] sm:$0xff]
    %v64 = vld [vmem:[#allocation2 + $0x18] sm:$0xff]
    %v65 = vld [vmem:[#allocation2 + $0x20] sm:$0xff]
    %v66 = vld [vmem:[#allocation2 + $0x28] sm:$0xff]
    %v67 = vld [vmem:[#allocation2 + $0x30] sm:$0xff]
    %v68 = vld [vmem:[#allocation2 + $0x38] sm:$0xf]
    %v69 = vmul.f32 %v53, %v53
    %v70 = vmul.f32 %v54, %v54
    %v71 = vmul.f32 %v55, %v55
    %v72 = vmul.f32 %v56, %v56
    %v73 = vmul.f32 %v57, %v57
    %v74 = vmul.f32 %v58, %v58
    %v75 = vmul.f32 %v59, %v59
    %v76 = vmul.f32 %v60, %v60
    %v77 = vadd.f32 %v61, %v69
    %v78 = vadd.f32 %v62, %v70
    %v79 = vadd.f32 %v63, %v71
    %v80 = vadd.f32 %v64, %v72
    %v81 = vadd.f32 %v65, %v73
    %v82 = vadd.f32 %v66, %v74
    %v83 = vadd.f32 %v67, %v75
    %v84 = vadd.f32 %v68, %v76
    %85 = vst [vmem:[#allocation2] sm:$0xff] %v77
    %86 = vst [vmem:[#allocation2 + $0x8] sm:$0xff] %v78
    %87 = vst [vmem:[#allocation2 + $0x10] sm:$0xff] %v79
    %88 = vst [vmem:[#allocation2 + $0x18] sm:$0xff] %v80
    %89 = vst [vmem:[#allocation2 + $0x20] sm:$0xff] %v81
    %90 = vst [vmem:[#allocation2 + $0x28] sm:$0xff] %v82
    %91 = vst [vmem:[#allocation2 + $0x30] sm:$0xff] %v83
    %92 = vst [vmem:[#allocation2 + $0x38] sm:$0xf] %v84
    // Predicated region
    $region10: #{_loss_impl_fn.7} parent=1 // pred_check
      %p93 = pneg %p41
    $region11: #{_loss_impl_fn.7} parent=1 // pred_check_branch
      %95 = sbr.rel (%p93) target = $region13
    $region12: #{_loss_impl_fn.7} parent=1 // pred_region
      %v96 = vld [vmem:[#allocation2] sm:$0xff]
      %v97 = vld [vmem:[#allocation2 + $0x8] sm:$0xff]
      %v98 = vld [vmem:[#allocation2 + $0x10] sm:$0xff]
      %v99 = vld [vmem:[#allocation2 + $0x18] sm:$0xff]
      %v100 = vld [vmem:[#allocation2 + $0x20] sm:$0xff]
      %v101 = vld [vmem:[#allocation2 + $0x28] sm:$0xff]
      %v102 = vld [vmem:[#allocation2 + $0x30] sm:$0xff]
      %v103 = vld [vmem:[#allocation2 + $0x38] sm:$0xf]
      %v104 = vadd.f32 %v96, %v97
      %v105 = vadd.f32 %v104, %v98
      %v106 = vadd.f32 %v105, %v99
      %v107 = vadd.f32 %v106, %v100
      %v108 = vadd.f32 %v107, %v101
      %v109 = vadd.f32 %v108, %v102
      %vm110 = vcmask 1043456
      %v111 = vsel %vm110, %v103, 0.0
      %v112 = vadd.f32 %v109, %v111
      %113 = vadd.xlane.f32.xlu0 %v112
      %v114 = vpop.xlane.xlu0 %113
      %v115 = vrot.slane %v114, 4
      %v116 = vadd.f32 %v114, %v115
      %v117 = vrot.slane %v116, 2
      %v118 = vadd.f32 %v116, %v117
      %v119 = vrot.slane %v118, 1
      %v120 = vadd.f32 %v118, %v119
      %s121 = vtos %v120
      %v122 = vstv %s121
      %vm123 = vcmask 0
      %124 = vst.msk [vmem:[#allocation3] sm:$0x1] %vm123, %v122
    $region13: #{_loss_impl_fn.7} parent=1 // pred_fallthru
      _
    // Predicated region
    $region14: #{_loss_impl_fn.7} parent=1 // pred_check
      _
    $region15: #{_loss_impl_fn.7} parent=1 // pred_check_branch
      %126 = sbr.rel (0) target = $region17
    $region16: #{_loss_impl_fn.7} parent=1 // pred_region
      %s128 = ssub.s32 16, 16
      %129 = vsyncadd [#allocation4], %s128
      %s131 = sshll.u32 [#allocation3], 4
      %s132 = int_to_ptr.vmem [resolvable:$true] %s131
      %134 = dma.vmem_to_hbm [thread:$0]  %s132, 16, %s1, [#allocation4]
    $region17: #{_loss_impl_fn.7} parent=1 // pred_fallthru
      _
    // Predicated region
    $region18: #{_loss_impl_fn.7} parent=1 // pred_check
      _
    $region19: #{_loss_impl_fn.7} parent=1 // pred_check_branch
      %136 = sbr.rel (0) target = $region21
    $region20: #{_loss_impl_fn.7} parent=1 // pred_region
      %137 = dma.done [#allocation4], 16
    $region21: #{_loss_impl_fn.7} parent=1 // pred_fallthru
      _
    %138 = vsyncpa [#allocation4], 1

// kernel: _loss_impl_fn.6
$region0: #{_loss_impl_fn.6}
  #allocation0 [shape = 'u32[]', space=smem, size = 0x4, offset = 0x4, fixed_abs, tag = 'smem constant byte address 0x4 - core index']
  #allocation1 [shape = 'u32[144,128]{1,0:T(1,128)}', space=vmem, size = 0x12000, scoped, tag = 'internal scratch']
  %s0 = inlined_call_operand.vmem [shape: f32[2,2,64], index: 0, kind: input, shape index: {}]
  %s1 = inlined_call_operand.vmem [shape: f32[2,2,64], index: 1, kind: input, shape index: {}]
  %s2 = inlined_call_operand.vmem [shape: f32[2,1,64], index: 2, kind: input, shape index: {}]
  %s3 = inlined_call_operand.vmem [shape: f32[2,1,64], index: 3, kind: input, shape index: {}]
  %s4 = inlined_call_operand.hbm [shape: f32[1,1], index: 4, kind: output, shape index: {}]
  %s5 = sld [smem:[#allocation0]]
  $region53: #{_loss_impl_fn.6} parent=0
    _
  %s7 = ssub.s32 1, %s5
  %s8 = scalar_select 0, %s7, %s5
  $region1: #{_loss_impl_fn.6} parent=0
    #allocation2 [shape = 'u8[512]{0}', space=vmem, size = 0x400, scoped, tag = 'output window, operand 0, single buffered']
    #allocation3 [shape = 's32[2]{0}', space=sflag, size = 0x8, scoped, tag = 'scoped memory for _loss_impl_fn.6']
    %9 = vsyncpa [#allocation3], 0
    loop: start=0, step=1, limit=4
    $region2: #{_loss_impl_fn.6} parent=1 // loop_pre_header
      _
    $region3: #{_loss_impl_fn.6} parent=1 // loop_header
      %s11 = sphi 0, %s15
      %p12 = scmp.ge.s32.totalorder %s11, 4
      %s21 = sphi 0, %s23
      %s24 = sphi 0, %s21
      %s25 = sphi 0, %s24
      %s41 = sphi 0, %s25
      %s47 = sphi 0, %s49
      %s50 = sphi 0, %s47
      %s51 = sphi 0, %s50
      %s67 = sphi 0, %s51
      %s73 = sphi 0, %s75
      %s76 = sphi 0, %s73
      %s77 = sphi 0, %s76
      %s93 = sphi 0, %s77
      %s99 = sphi 0, %s101
      %s102 = sphi 0, %s99
      %s103 = sphi 0, %s102
      %s119 = sphi 0, %s103
      %s123 = sphi 0, %s123
      %s125 = sphi 0, %s123
      %s126 = sphi 0, %s125
      %s140 = sphi 0, %s126
    $region4: #{_loss_impl_fn.6} parent=1 // loop_header_branch
      %14 = sbr.rel (%p12) target = $region8
    $region5: #{_loss_impl_fn.6} parent=1 // loop_body
      %s16 = ssub.s32 %s11, 1
      %s17 = ssub.s32 %s11, 2
      %s18 = sadd.s32 %s11, 1
      %s19 = ssub.s32 %s11, %s18
      %p20 = scmp.eq.s32.totalorder %s19, 0
      %s22 = sadd.s32 %s21, 1
      %s23 = scalar_select %p20, %s21, %s22
      %p26 = pneg %p20
      %p27 = scmp.eq.s32.totalorder %s11, 1
      %p28 = por %p26, %p27
      %p29 = scmp.ne.s32.totalorder %s21, %s24
      %p30 = scmp.eq.s32.totalorder %s11, 0
      %p31 = por %p29, %p30
      %p32 = scmp.ne.s32.totalorder %s21, %s24
      %p33 = scmp.eq.s32.totalorder %s16, 1
      %p34 = por %p32, %p33
      %p35 = scmp.ne.s32.totalorder %s24, %s25
      %p36 = scmp.eq.s32.totalorder %s16, 0
      %p37 = por %p35, %p36
      %p38 = scmp.ne.s32.totalorder %s24, %s25
      %p39 = scmp.eq.s32.totalorder %s17, 1
      %p40 = por %p38, %p39
      %p42 = scmp.ne.s32.totalorder %s25, %s41
      %p43 = scmp.eq.s32.totalorder %s17, 0
      %p44 = por %p42, %p43
      %s45 = ssub.s32 %s11, %s18
      %p46 = scmp.eq.s32.totalorder %s45, 0
      %s48 = sadd.s32 %s47, 1
      %s49 = scalar_select %p46, %s47, %s48
      %p52 = pneg %p46
      %p53 = scmp.eq.s32.totalorder %s11, 1
      %p54 = por %p52, %p53
      %p55 = scmp.ne.s32.totalorder %s47, %s50
      %p56 = scmp.eq.s32.totalorder %s11, 0
      %p57 = por %p55, %p56
      %p58 = scmp.ne.s32.totalorder %s47, %s50
      %p59 = scmp.eq.s32.totalorder %s16, 1
      %p60 = por %p58, %p59
      %p61 = scmp.ne.s32.totalorder %s50, %s51
      %p62 = scmp.eq.s32.totalorder %s16, 0
      %p63 = por %p61, %p62
      %p64 = scmp.ne.s32.totalorder %s50, %s51
      %p65 = scmp.eq.s32.totalorder %s17, 1
      %p66 = por %p64, %p65
      %p68 = scmp.ne.s32.totalorder %s51, %s67
      %p69 = scmp.eq.s32.totalorder %s17, 0
      %p70 = por %p68, %p69
      %s71 = ssub.s32 %s11, %s18
      %p72 = scmp.eq.s32.totalorder %s71, 0
      %s74 = sadd.s32 %s73, 1
      %s75 = scalar_select %p72, %s73, %s74
      %p78 = pneg %p72
      %p79 = scmp.eq.s32.totalorder %s11, 1
      %p80 = por %p78, %p79
      %p81 = scmp.ne.s32.totalorder %s73, %s76
      %p82 = scmp.eq.s32.totalorder %s11, 0
      %p83 = por %p81, %p82
      %p84 = scmp.ne.s32.totalorder %s73, %s76
      %p85 = scmp.eq.s32.totalorder %s16, 1
      %p86 = por %p84, %p85
      %p87 = scmp.ne.s32.totalorder %s76, %s77
      %p88 = scmp.eq.s32.totalorder %s16, 0
      %p89 = por %p87, %p88
      %p90 = scmp.ne.s32.totalorder %s76, %s77
      %p91 = scmp.eq.s32.totalorder %s17, 1
      %p92 = por %p90, %p91
      %p94 = scmp.ne.s32.totalorder %s77, %s93
      %p95 = scmp.eq.s32.totalorder %s17, 0
      %p96 = por %p94, %p95
      %s97 = ssub.s32 %s11, %s18
      %p98 = scmp.eq.s32.totalorder %s97, 0
      %s100 = sadd.s32 %s99, 1
      %s101 = scalar_select %p98, %s99, %s100
      %p104 = pneg %p98
      %p105 = scmp.eq.s32.totalorder %s11, 1
      %p106 = por %p104, %p105
      %p107 = scmp.ne.s32.totalorder %s99, %s102
      %p108 = scmp.eq.s32.totalorder %s11, 0
      %p109 = por %p107, %p108
      %p110 = scmp.ne.s32.totalorder %s99, %s102
      %p111 = scmp.eq.s32.totalorder %s16, 1
      %p112 = por %p110, %p111
      %p113 = scmp.ne.s32.totalorder %s102, %s103
      %p114 = scmp.eq.s32.totalorder %s16, 0
      %p115 = por %p113, %p114
      %p116 = scmp.ne.s32.totalorder %s102, %s103
      %p117 = scmp.eq.s32.totalorder %s17, 1
      %p118 = por %p116, %p117
      %p120 = scmp.ne.s32.totalorder %s103, %s119
      %p121 = scmp.eq.s32.totalorder %s17, 0
      %p122 = por %p120, %p121
      %s124 = sadd.s32 %s123, 1
      %p127 = scmp.eq.s32.totalorder %s11, 1
      %p128 = scmp.ne.s32.totalorder %s123, %s125
      %p129 = scmp.eq.s32.totalorder %s11, 0
      %p130 = por %p128, %p129
      %p131 = scmp.ne.s32.totalorder %s123, %s125
      %p132 = scmp.eq.s32.totalorder %s16, 1
      %p133 = por %p131, %p132
      %p134 = scmp.ne.s32.totalorder %s125, %s126
      %p135 = scmp.eq.s32.totalorder %s16, 0
      %p136 = por %p134, %p135
      %p137 = scmp.ne.s32.totalorder %s125, %s126
      %p138 = scmp.eq.s32.totalorder %s17, 1
      %p139 = por %p137, %p138
      %p141 = scmp.ne.s32.totalorder %s126, %s140
      %p142 = scmp.eq.s32.totalorder %s17, 0
      %p143 = por %p141, %p142
      %p144 = scmp.le.s32.totalorder 1, %s11
      %p145 = scmp.lt.s32.totalorder %s11, 3
      %p146 = pnand %p144, %p145
      %p147 = pneg %p146
      // Predicated region
      $region9: #{_loss_impl_fn.6} parent=5 // pred_check
        _
      $region10: #{_loss_impl_fn.6} parent=5 // pred_check_branch
        %149 = sbr.rel (%p146) target = $region12
      $region11: #{_loss_impl_fn.6} parent=5 // pred_region
        %s150 = ssub.s32 %s11, 1
      $region12: #{_loss_impl_fn.6} parent=5 // pred_fallthru
        _
      %p151 = scmp.lt.s32.totalorder %s11, 2
      // Predicated region
      $region13: #{_loss_impl_fn.6} parent=5 // pred_check
        %p152 = pneg %p151
      $region14: #{_loss_impl_fn.6} parent=5 // pred_check_branch
        %154 = sbr.rel (%p152) target = $region16
      $region15: #{_loss_impl_fn.6} parent=5 // pred_region
        // Predicated region
        $region17: #{_loss_impl_fn.6} parent=15 // pred_check
          %p155 = pneg %p31
        $region18: #{_loss_impl_fn.6} parent=15 // pred_check_branch
          %157 = sbr.rel (%p155) target = $region20
        $region19: #{_loss_impl_fn.6} parent=15 // pred_region
          %p158 = scmp.lt.s32.totalorder %s11, 1
          %s159 = scalar_select %p158, %s11, 1
          %s160 = smul.addr %s159, 2
          %s161 = scalar_lea.vmem %s0, %s160
        $region20: #{_loss_impl_fn.6} parent=15 // pred_fallthru
          _
        // Predicated region
        $region21: #{_loss_impl_fn.6} parent=15 // pred_check
          %p162 = pneg %p57
        $region22: #{_loss_impl_fn.6} parent=15 // pred_check_branch
          %164 = sbr.rel (%p162) target = $region24
        $region23: #{_loss_impl_fn.6} parent=15 // pred_region
          %p165 = scmp.lt.s32.totalorder %s11, 1
          %s166 = scalar_select %p165, %s11, 1
          %s167 = smul.addr %s166, 2
          %s168 = scalar_lea.vmem %s1, %s167
        $region24: #{_loss_impl_fn.6} parent=15 // pred_fallthru
          _
        // Predicated region
        $region25: #{_loss_impl_fn.6} parent=15 // pred_check
          %p169 = pneg %p83
        $region26: #{_loss_impl_fn.6} parent=15 // pred_check_branch
          %171 = sbr.rel (%p169) target = $region28
        $region27: #{_loss_impl_fn.6} parent=15 // pred_region
          %p172 = scmp.lt.s32.totalorder %s11, 1
          %s173 = scalar_select %p172, %s11, 1
          %s174 = scalar_lea.vmem %s2, %s173
        $region28: #{_loss_impl_fn.6} parent=15 // pred_fallthru
          _
        // Predicated region
        $region29: #{_loss_impl_fn.6} parent=15 // pred_check
          %p175 = pneg %p109
        $region30: #{_loss_impl_fn.6} parent=15 // pred_check_branch
          %177 = sbr.rel (%p175) target = $region32
        $region31: #{_loss_impl_fn.6} parent=15 // pred_region
          %p178 = scmp.lt.s32.totalorder %s11, 1
          %s179 = scalar_select %p178, %s11, 1
          %s180 = scalar_lea.vmem %s3, %s179
        $region32: #{_loss_impl_fn.6} parent=15 // pred_fallthru
          _
      $region16: #{_loss_impl_fn.6} parent=5 // pred_fallthru
        _
      %p181 = scmp.le.s32.totalorder 1, %s11
      %p182 = scmp.lt.s32.totalorder %s11, 3
      %p183 = pnand %p181, %p182
      %p184 = pneg %p183
      // Predicated region
      $region33: #{_loss_impl_fn.6} parent=5 // pred_check
        _
      $region34: #{_loss_impl_fn.6} parent=5 // pred_check_branch
        %186 = sbr.rel (%p183) target = $region36
      $region35: #{_loss_impl_fn.6} parent=5 // pred_region
        %s187 = ssub.s32 %s11, 1
        %p188 = scmp.lt.s32.totalorder %s16, 1
        %s189 = scalar_select %p188, %s16, 1
        %s190 = smul.addr %s189, 2
        %s191 = scalar_lea.vmem %s0, %s190
        %p192 = pneg %p37
        %p193 = pneg %p34
        %p194 = scmp.lt.s32.totalorder %s16, 1
        %s195 = scalar_select %p194, %s16, 1
        %s196 = smul.addr %s195, 2
        %s197 = scalar_lea.vmem %s1, %s196
        %p198 = pneg %p63
        %p199 = pneg %p60
        %p200 = scmp.lt.s32.totalorder %s16, 1
        %s201 = scalar_select %p200, %s16, 1
        %s202 = scalar_lea.vmem %s2, %s201
        %p203 = pneg %p89
        %p204 = pneg %p86
        %p205 = scmp.lt.s32.totalorder %s16, 1
        %s206 = scalar_select %p205, %s16, 1
        %s207 = scalar_lea.vmem %s3, %s206
        %p208 = pneg %p115
        %p209 = pneg %p112
        %p210 = pneg %p136
        %p211 = pneg %p133
        %p212 = scmp.lt.s32.totalorder %s16, 1
        %s213 = scalar_select %p212, %s16, 1
        %s214 = smul.addr %s213, 2
        %s215 = scalar_lea.vmem %s0, %s214
        %p216 = scmp.lt.s32.totalorder %s16, 1
        %s217 = scalar_select %p216, %s16, 1
        %s218 = smul.addr %s217, 2
        %s219 = scalar_lea.vmem %s1, %s218
        %p220 = scmp.lt.s32.totalorder %s16, 1
        %s221 = scalar_select %p220, %s16, 1
        %s222 = scalar_lea.vmem %s2, %s221
        %p223 = scmp.lt.s32.totalorder %s16, 1
        %s224 = scalar_select %p223, %s16, 1
        %s225 = scalar_lea.vmem %s3, %s224
        %p226 = scmp.eq.s32.totalorder %s16, 0
        // Predicated region
        $region37: #{_loss_impl_fn.6} parent=35 // pred_check
          %p227 = pneg %p226
        $region38: #{_loss_impl_fn.6} parent=35 // pred_check_branch
          %229 = sbr.rel (%p227) target = $region40
        $region39: #{_loss_impl_fn.6} parent=35 // pred_region
          %vm230 = vcmask 0
          %231 = vst.msk [vmem:[#allocation2] sm:$0x1] %vm230, 0.0
        $region40: #{_loss_impl_fn.6} parent=35 // pred_fallthru
          _
        %v232 = vld [vmem:[%s215] sm:$0x3]
        %v233 = vld [vmem:[%s219] sm:$0x3]
        %v234 = vld [vmem:[%s222] sm:$0x1]
        %v235 = vld [vmem:[%s225] sm:$0x1]
        %v237 = vlaneseq
        %v238 = vshrl.u32 %v237, 7
        %v239 = vsub.s32 0, %v238
        %v240 = vrot.slane %v235, %v239
        %v242 = vsub.f32 %v240, %v233
        %v243 = vsub.f32 %v233, %v240
        %v244 = vmul.f32 %v243, 1.442695
        %v245 = vpow.pop %v244
        %v246 = vadd.f32 %v242, %v245
        %v248 = vlaneseq
        %v249 = vshrl.u32 %v248, 7
        %v250 = vsub.s32 0, %v249
        %v251 = vrot.slane %v234, %v250
        %v253 = vsub.f32 %v232, %v251
        %v254 = vmul.f32 %v235, -0.5
        %v255 = vmul.f32 %v254, 1.442695
        %v256 = vpow.pop %v255
        %v258 = vlaneseq
        %v259 = vshrl.u32 %v258, 7
        %v260 = vsub.s32 0, %v259
        %v261 = vrot.slane %v256, %v260
        %v263 = vmul.f32 %v253, %v261
        %v264 = vmul.f32 %v263, %v263
        %v265 = vadd.f32 %v246, %v264
        %v266 = vsub.f32 %v265, 1.0
        %v267 = vmul.f32 %v266, 0.5
        %v268 = vld [vmem:[#allocation2] sm:$0x1]
        %vm269 = vcmask 517120
        %v270 = vsel %vm269, %v267, 0.0
        %271 = vadd.xlane.f32.xlu0 %v270
        %v272 = vpop.xlane.xlu0 %271
        %v273 = vrot.slane %v272, 4
        %v274 = vadd.f32 %v272, %v273
        %v275 = vrot.slane %v274, 2
        %v276 = vadd.f32 %v274, %v275
        %v277 = vrot.slane %v276, 1
        %v278 = vadd.f32 %v276, %v277
        %s279 = vtos %v278
        %v280 = vstv %s279
        %v281 = vadd.f32 %v268, %v280
        %vm282 = vcmask 0
        %283 = vst.msk [vmem:[#allocation2] sm:$0x1] %vm282, %v281
        // Predicated region
        $region41: #{_loss_impl_fn.6} parent=35 // pred_check
          %p284 = pneg %p133
        $region42: #{_loss_impl_fn.6} parent=35 // pred_check_branch
          %286 = sbr.rel (%p284) target = $region44
        $region43: #{_loss_impl_fn.6} parent=35 // pred_region
          %s288 = ssub.s32 16, 16
          %289 = vsyncadd [#allocation3], %s288
          %s291 = sshll.u32 [#allocation2], 4
          %s292 = int_to_ptr.vmem [resolvable:$true] %s291
          %294 = dma.vmem_to_hbm [thread:$0]  %s292, 16, %s4, [#allocation3]
        $region44: #{_loss_impl_fn.6} parent=35 // pred_fallthru
          _
        // Predicated region
        $region45: #{_loss_impl_fn.6} parent=35 // pred_check
          %p295 = pneg %p133
        $region46: #{_loss_impl_fn.6} parent=35 // pred_check_branch
          %297 = sbr.rel (%p295) target = $region48
        $region47: #{_loss_impl_fn.6} parent=35 // pred_region
          %298 = dma.done [#allocation3], 16
        $region48: #{_loss_impl_fn.6} parent=35 // pred_fallthru
          _
      $region36: #{_loss_impl_fn.6} parent=5 // pred_fallthru
        _
      %p299 = scmp.le.s32.totalorder 2, %s11
      // Predicated region
      $region49: #{_loss_impl_fn.6} parent=5 // pred_check
        %p300 = pneg %p299
      $region50: #{_loss_impl_fn.6} parent=5 // pred_check_branch
        %302 = sbr.rel (%p300) target = $region52
      $region51: #{_loss_impl_fn.6} parent=5 // pred_region
        %s303 = ssub.s32 %s11, 2
      $region52: #{_loss_impl_fn.6} parent=5 // pred_fallthru
        _
    $region6: #{_loss_impl_fn.6} parent=1 // loop_footer
      %s15 = sadd.s32 1, %s11
    $region7: #{_loss_impl_fn.6} parent=1 // loop_footer_branch
      %10 = sbr.rel target = $region3
    $region8: #{_loss_impl_fn.6} parent=1 // loop_exit
      _
    %304 = vsyncpa [#allocation3], 1
    %s305 = scalar_lea.sflag [#allocation3], 1
    %306 = vsyncpa %s305, 1

// kernel: _loss_impl_fn.5
$region0: #{_loss_impl_fn.5}
  #allocation0 [shape = 'u32[]', space=smem, size = 0x4, offset = 0x4, fixed_abs, tag = 'smem constant byte address 0x4 - core index']
  #allocation1 [shape = 'u32[144,128]{1,0:T(1,128)}', space=vmem, size = 0x12000, scoped, tag = 'internal scratch']
  #allocation2 [shape = 'f32[6,128]{1,0:T(8,128)}', space=vmem, size = 0x1000, scoped, tag = 'scratch operand']
  %s0 = inlined_call_operand.vmem [shape: f32[6,128], index: 0, kind: input, shape index: {}]
  %s1 = inlined_call_operand.vmem [shape: f32[6,128], index: 1, kind: input, shape index: {}]
  %s2 = inlined_call_operand.hbm [shape: f32[1,1,1], index: 2, kind: output, shape index: {}]
  %s3 = sld [smem:[#allocation0]]
  $region26: #{_loss_impl_fn.5} parent=0
    _
  %s5 = ssub.s32 1, %s3
  %s6 = scalar_select 0, %s5, %s3
  $region1: #{_loss_impl_fn.5} parent=0
    #allocation3 [shape = 'u8[512]{0}', space=vmem, size = 0x400, scoped, tag = 'output window, operand 0, single buffered']
    #allocation4 [shape = 's32[1]{0}', space=sflag, size = 0x4, scoped, tag = 'scoped memory for _loss_impl_fn.5']
    %7 = vsyncpa [#allocation4], 0
    // Predicated region
    $region2: #{_loss_impl_fn.5} parent=1 // pred_check
      _
    $region3: #{_loss_impl_fn.5} parent=1 // pred_check_branch
      %9 = sbr.rel (0) target = $region5
    $region4: #{_loss_impl_fn.5} parent=1 // pred_region
      %s10 = sadd.s32 0, 0
      %p11 = scmp.lt.s32.totalorder %s10, 0
      %s12 = scalar_select %p11, %s10, 0
      %p13 = scmp.lt.s32.totalorder %s12, 0
      %s14 = scalar_select %p13, %s12, 0
      %s15 = smul.addr %s14, 8
      %s16 = scalar_lea.vmem %s0, %s15
      %s17 = sadd.s32 0, 0
      %p18 = scmp.lt.s32.totalorder %s17, 0
      %s19 = scalar_select %p18, %s17, 0
    $region5: #{_loss_impl_fn.5} parent=1 // pred_fallthru
      _
    // Predicated region
    $region6: #{_loss_impl_fn.5} parent=1 // pred_check
      _
    $region7: #{_loss_impl_fn.5} parent=1 // pred_check_branch
      %21 = sbr.rel (0) target = $region9
    $region8: #{_loss_impl_fn.5} parent=1 // pred_region
      %s22 = sadd.s32 0, 0
      %p23 = scmp.lt.s32.totalorder %s22, 0
      %s24 = scalar_select %p23, %s22, 0
      %p25 = scmp.lt.s32.totalorder %s24, 0
      %s26 = scalar_select %p25, %s24, 0
      %s27 = smul.addr %s26, 8
      %s28 = scalar_lea.vmem %s1, %s27
      %s29 = sadd.s32 0, 0
      %p30 = scmp.lt.s32.totalorder %s29, 0
      %s31 = scalar_select %p30, %s29, 0
    $region9: #{_loss_impl_fn.5} parent=1 // pred_fallthru
      _
    %s32 = sadd.s32 0, 0
    %p33 = scmp.lt.s32.totalorder %s32, 0
    %s34 = scalar_select %p33, %s32, 0
    %p35 = scmp.lt.s32.totalorder %s34, 0
    %s36 = scalar_select %p35, %s34, 0
    %s37 = smul.addr %s36, 8
    %s38 = scalar_lea.vmem %s0, %s37
    %s39 = sadd.s32 0, 0
    %p40 = scmp.lt.s32.totalorder %s39, 0
    %s41 = scalar_select %p40, %s39, 0
    %p42 = scmp.lt.s32.totalorder %s41, 0
    %s43 = scalar_select %p42, %s41, 0
    %s44 = smul.addr %s43, 8
    %s45 = scalar_lea.vmem %s1, %s44
    %s46 = sadd.s32 0, 0
    %p47 = scmp.lt.s32.totalorder %s46, 0
    %s48 = scalar_select %p47, %s46, 0
    %p49 = scmp.lt.s32.totalorder %s48, 0
    %s50 = scalar_select %p49, %s48, 0
    %s51 = smul.addr %s50, 8
    %s52 = scalar_lea.vmem %s0, %s51
    %s53 = sadd.s32 0, 0
    %p54 = scmp.lt.s32.totalorder %s53, 0
    %s55 = scalar_select %p54, %s53, 0
    %s56 = sadd.s32 0, 0
    %p57 = scmp.lt.s32.totalorder %s56, 0
    %s58 = scalar_select %p57, %s56, 0
    %p59 = scmp.lt.s32.totalorder %s58, 0
    %s60 = scalar_select %p59, %s58, 0
    %s61 = smul.addr %s60, 8
    %s62 = scalar_lea.vmem %s1, %s61
    %s63 = sadd.s32 0, 0
    %p64 = scmp.lt.s32.totalorder %s63, 0
    %s65 = scalar_select %p64, %s63, 0
    %p66 = scmp.eq.s32.totalorder 0, 0
    // Predicated region
    $region10: #{_loss_impl_fn.5} parent=1 // pred_check
      %p67 = pneg %p66
    $region11: #{_loss_impl_fn.5} parent=1 // pred_check_branch
      %69 = sbr.rel (%p67) target = $region13
    $region12: #{_loss_impl_fn.5} parent=1 // pred_region
      %70 = vst [vmem:[#allocation2] sm:$0x3f] 0.0
    $region13: #{_loss_impl_fn.5} parent=1 // pred_fallthru
      _
    %v71 = vld [vmem:[%s52] sm:$0x3f]
    %v72 = vld [vmem:[%s62] sm:$0x3f]
    %v73 = vsub.f32 %v71, %v72
    %v74 = vld [vmem:[#allocation2] sm:$0x3f]
    %v75 = vmul.f32 %v73, %v73
    %v76 = vadd.f32 %v74, %v75
    %77 = vst [vmem:[#allocation2] sm:$0x3f] %v76
    // Predicated region
    $region14: #{_loss_impl_fn.5} parent=1 // pred_check
      %p78 = pneg %p66
    $region15: #{_loss_impl_fn.5} parent=1 // pred_check_branch
      %80 = sbr.rel (%p78) target = $region17
    $region16: #{_loss_impl_fn.5} parent=1 // pred_region
      %v81 = vld [vmem:[#allocation2] sm:$0x3f]
      %vm82 = vcmask 1045504
      %v83 = vsel %vm82, %v81, 0.0
      %84 = vadd.xlane.f32.xlu0 %v83
      %v85 = vpop.xlane.xlu0 %84
      %v86 = vrot.slane %v85, 4
      %v87 = vadd.f32 %v85, %v86
      %v88 = vrot.slane %v87, 2
      %v89 = vadd.f32 %v87, %v88
      %v90 = vrot.slane %v89, 1
      %v91 = vadd.f32 %v89, %v90
      %s92 = vtos %v91
      %v93 = vstv %s92
      %vm94 = vcmask 0
      %95 = vst.msk [vmem:[#allocation3] sm:$0x1] %vm94, %v93
    $region17: #{_loss_impl_fn.5} parent=1 // pred_fallthru
      _
    // Predicated region
    $region18: #{_loss_impl_fn.5} parent=1 // pred_check
      _
    $region19: #{_loss_impl_fn.5} parent=1 // pred_check_branch
      %97 = sbr.rel (0) target = $region21
    $region20: #{_loss_impl_fn.5} parent=1 // pred_region
      %s99 = ssub.s32 16, 16
      %100 = vsyncadd [#allocation4], %s99
      %s102 = sshll.u32 [#allocation3], 4
      %s103 = int_to_ptr.vmem [resolvable:$true] %s102
      %105 = dma.vmem_to_hbm [thread:$0]  %s103, 16, %s2, [#allocation4]
    $region21: #{_loss_impl_fn.5} parent=1 // pred_fallthru
      _
    // Predicated region
    $region22: #{_loss_impl_fn.5} parent=1 // pred_check
      _
    $region23: #{_loss_impl_fn.5} parent=1 // pred_check_branch
      %107 = sbr.rel (0) target = $region25
    $region24: #{_loss_impl_fn.5} parent=1 // pred_region
      %108 = dma.done [#allocation4], 16
    $region25: #{_loss_impl_fn.5} parent=1 // pred_fallthru
      _
    %109 = vsyncpa [#allocation4], 1

</llo_original>
